<compile_context>
chip_gen: v6e
topology: v6e:2x2x1
jax: 0.10.0
libtpu: 0.0.40
codegen_flags: <defaults>
</compile_context>

<pallas_src>
import math
import functools

import jax
import jax.numpy as jnp
from jax import lax
from jax.experimental import pallas as pl
from jax.experimental.pallas import tpu as pltpu


def _round_up(x: int, m: int) -> int:
    return ((x + m - 1) // m) * m


def _gather_embed_kernel(ids_ref, table_ref, out_ref, gather_buf, dma_sem,
                         *, scale, tok_tile, vocab):
    # ids_ref:    (T_pad,) int32 token ids, scalar-prefetched into SMEM.
    # table_ref:  (vocab, emb) embedding table, raw HBM ref (pl.ANY).
    # out_ref:    (tok_tile, emb) dense VMEM output block.
    # gather_buf: (tok_tile, emb) VMEM scratch holding this tile's rows.
    # dma_sem:    DMA completion semaphore.
    i = pl.program_id(0)
    base = i * tok_tile

    # Issue all row-gather DMAs for this tile (they overlap each other in
    # flight while the scalar unit keeps issuing).
    def issue_one(t, carry):
        token = ids_ref[base + t]
        token = jnp.clip(token, 0, vocab - 1)   # nn.Embedding would error on OOB
        pltpu.make_async_copy(table_ref.at[token], gather_buf.at[t],
                              dma_sem).start()
        return carry

    lax.fori_loop(0, tok_tile, issue_one, 0)

    # Drain all row DMAs (wait descriptor only needs the right shape).
    def wait_one(t, carry):
        pltpu.make_async_copy(table_ref.at[0], gather_buf.at[t],
                              dma_sem).wait()
        return carry

    lax.fori_loop(0, tok_tile, wait_one, 0)

    # Single vectorized pass: fold the sqrt(emb_size) scale into the store.
    out_ref[...] = (gather_buf[...] * scale).astype(out_ref.dtype)


def token_embedding(tokens, emb_table, *, tok_tile=512):
    """tokens: [seq_len, batch] int32, emb_table: [vocab, emb_size] f32.
       returns: [seq_len, batch, emb_size] = embedding(tokens) * sqrt(emb_size)."""
    seq_len, batch = tokens.shape
    vocab, emb_size = emb_table.shape
    scale = float(math.sqrt(emb_size))

    T = seq_len * batch
    # Sublane-aligned tile; force >= 2 tiles when T allows so the "parallel"
    # grid axis can be split across v7x's two TensorCores (free on v5e/v6e).
    tok_tile = max(8, min(tok_tile, _round_up(-(-T // 2), 8)))
    T_pad = _round_up(T, tok_tile)
    num_tiles = T_pad // tok_tile

    flat_ids = tokens.reshape(T).astype(jnp.int32)
    if T_pad != T:
        flat_ids = jnp.pad(flat_ids, (0, T_pad - T))   # pad with id 0 (discarded)

    dtype_bytes = jnp.dtype(emb_table.dtype).itemsize
    kernel = functools.partial(_gather_embed_kernel, scale=scale,
                               tok_tile=tok_tile, vocab=vocab)

    # Output blocks are double-buffered by the pipeline; gather scratch single.
    vmem_need = 4 * tok_tile * emb_size * dtype_bytes + (2 << 20)
    vmem_limit = min(max(vmem_need, 16 << 20), 48 << 20)

    out_flat = pl.pallas_call(
        kernel,
        out_shape=jax.ShapeDtypeStruct((T_pad, emb_size), emb_table.dtype),
        grid_spec=pltpu.PrefetchScalarGridSpec(
            num_scalar_prefetch=1,               # flat_ids -> SMEM
            grid=(num_tiles,),
            in_specs=[
                # Table stays in HBM; rows are gathered with manual DMAs.
                pl.BlockSpec(memory_space=pl.ANY),
            ],
            # Dense (8,128)-aligned output tile -> unmasked full-vreg stores.
            out_specs=pl.BlockSpec((tok_tile, emb_size), lambda i, ids: (i, 0)),
            scratch_shapes=[
                pltpu.VMEM((tok_tile, emb_size), emb_table.dtype),
                pltpu.SemaphoreType.DMA(()),
            ],
        ),
        compiler_params=pltpu.CompilerParams(
            dimension_semantics=("parallel",),   # independent token tiles
            vmem_limit_bytes=vmem_limit,
        ),
        cost_estimate=pl.CostEstimate(
            flops=T_pad * emb_size,              # scale multiply only
            transcendentals=0,
            bytes_accessed=(T_pad * 4                                  # ids
                            + T_pad * emb_size * dtype_bytes           # gathered rows
                            + T_pad * emb_size * dtype_bytes),         # output
        ),
    )(flat_ids, emb_table)

    return out_flat[:T].reshape(seq_len, batch, emb_size)


if __name__ == "__main__":
    # Small deterministic setup consistent with the module's forward().
    vocab_size = 32
    emb_size = 128
    seq_len = 8
    batch_size = 2

    key = jax.random.PRNGKey(0)
    k_emb, k_tok = jax.random.split(key)

    # nn.Embedding weight ~ N(0, 1) by default.
    emb_table = jax.random.normal(k_emb, (vocab_size, emb_size), dtype=jnp.float32)
    tokens = jax.random.randint(k_tok, (seq_len, batch_size), 0, vocab_size,
                                dtype=jnp.int32)

    out = token_embedding(tokens, emb_table)
    out = jax.block_until_ready(out)

    # Reference: embedding lookup * sqrt(emb_size).
    ref = jnp.take(emb_table, tokens, axis=0) * math.sqrt(emb_size)
    assert out.shape == (seq_len, batch_size, emb_size)
    assert jnp.allclose(out, ref, atol=1e-5, rtol=1e-5), float(
        jnp.max(jnp.abs(out - ref)))

    print("KERNEL_OK")
</pallas_src>

<mosaic_0001>
module attributes {stable_mosaic.version = 11 : i64} {
  func.func @_gather_embed_kernel(%arg0: i32, %arg1: memref<16xi32, #tpu.memory_space<smem>>, %arg2: memref<32x128xf32, #tpu.memory_space<any>>, %arg3: memref<8x128xf32, #tpu.memory_space<vmem>>, %arg4: memref<8x128xf32, #tpu.memory_space<vmem>>, %arg5: memref<!tpu.dma_semaphore, #tpu.memory_space<semaphore_mem>>) attributes {dimension_semantics = [#tpu.dimension_semantics<parallel>], iteration_bounds = array<i64: 2>, scalar_prefetch = 1 : i64, scratch_operands = 2 : i64, tpu.core_type = #tpu.core_type<tc>, window_params = [{}, {transform_indices = @transform_1, window_bounds = array<i64: 8, 128>}]} {
    %c8_i32 = arith.constant 8 : i32
    %0 = arith.muli %arg0, %c8_i32 : i32
    %c0_i32 = arith.constant 0 : i32
    %c8_i32_0 = arith.constant 8 : i32
    %1 = arith.addi %c0_i32, %c8_i32_0 : i32
    %c1_i32 = arith.constant 1 : i32
    scf.for %arg6 = %c0_i32 to %1 step %c1_i32  : i32 {
      %7 = arith.addi %0, %arg6 : i32
      %8 = arith.index_cast %7 : i32 to index
      %9 = memref.load %arg1[%8] : memref<16xi32, #tpu.memory_space<smem>>
      %c0_i32_9 = arith.constant 0 : i32
      %c31_i32 = arith.constant 31 : i32
      %10 = arith.maxsi %c0_i32_9, %9 : i32
      %11 = arith.minsi %c31_i32, %10 : i32
      %c0_i32_10 = arith.constant 0 : i32
      %12 = tpu.memref_slice %arg2[%11, %c0_i32_10] : memref<32x128xf32, #tpu.memory_space<any>> -> memref<1x128xf32, #tpu.memory_space<any>>
      %13 = tpu.memref_squeeze %12 : memref<1x128xf32, #tpu.memory_space<any>> -> memref<128xf32, #tpu.memory_space<any>>
      %c0_i32_11 = arith.constant 0 : i32
      %14 = tpu.memref_slice %arg4[%arg6, %c0_i32_11] : memref<8x128xf32, #tpu.memory_space<vmem>> -> memref<1x128xf32, #tpu.memory_space<vmem>>
      %15 = tpu.memref_squeeze %14 : memref<1x128xf32, #tpu.memory_space<vmem>> -> memref<128xf32, #tpu.memory_space<vmem>>
      tpu.enqueue_dma source(%13 : memref<128xf32, #tpu.memory_space<any>>) target(%15 : memref<128xf32, #tpu.memory_space<vmem>>) target_semaphore(%arg5 : memref<!tpu.dma_semaphore, #tpu.memory_space<semaphore_mem>>)
    }
    %c8_i32_1 = arith.constant 8 : i32
    %c0_i32_2 = arith.constant 0 : i32
    %c8_i32_3 = arith.constant 8 : i32
    %2 = arith.addi %c0_i32_2, %c8_i32_3 : i32
    %c1_i32_4 = arith.constant 1 : i32
    scf.for %arg6 = %c0_i32_2 to %2 step %c1_i32_4  : i32 {
      %c0_i32_9 = arith.constant 0 : i32
      %c0_i32_10 = arith.constant 0 : i32
      %7 = tpu.memref_slice %arg2[%c0_i32_9, %c0_i32_10] : memref<32x128xf32, #tpu.memory_space<any>> -> memref<1x128xf32, #tpu.memory_space<any>>
      %8 = tpu.memref_squeeze %7 : memref<1x128xf32, #tpu.memory_space<any>> -> memref<128xf32, #tpu.memory_space<any>>
      %c0_i32_11 = arith.constant 0 : i32
      %9 = tpu.memref_slice %arg4[%arg6, %c0_i32_11] : memref<8x128xf32, #tpu.memory_space<vmem>> -> memref<1x128xf32, #tpu.memory_space<vmem>>
      %10 = tpu.memref_squeeze %9 : memref<1x128xf32, #tpu.memory_space<vmem>> -> memref<128xf32, #tpu.memory_space<vmem>>
      tpu.wait_dma2 semaphore(%arg5 : memref<!tpu.dma_semaphore, #tpu.memory_space<semaphore_mem>>) src(%8 : memref<128xf32, #tpu.memory_space<any>>) dst(%10 : memref<128xf32, #tpu.memory_space<vmem>>)
    }
    %c8_i32_5 = arith.constant 8 : i32
    %c0 = arith.constant 0 : index
    %c0_6 = arith.constant 0 : index
    %3 = vector.load %arg4[%c0, %c0_6] : memref<8x128xf32, #tpu.memory_space<vmem>>, vector<8x128xf32>
    %cst = arith.constant 11.3137083 : f32
    %4 = vector.broadcast %cst : f32 to vector<8x128xf32>
    %5 = arith.mulf %3, %4 : vector<8x128xf32>
    %c0_7 = arith.constant 0 : index
    %c0_8 = arith.constant 0 : index
    %6 = vector.load %arg3[%c0_7, %c0_8] : memref<8x128xf32, #tpu.memory_space<vmem>>, vector<8x128xf32>
    tpu.vector_store %arg3[%c0_7, %c0_8], %5 {strides = array<i32>} : memref<8x128xf32, #tpu.memory_space<vmem>>, vector<8x128xf32>,
    return
  }
  func.func @transform_1(%arg0: i32, %arg1: memref<16xi32, #tpu.memory_space<smem>>) -> (i32, i32) {
    %c0_i32 = arith.constant 0 : i32
    %c0_i32_0 = arith.constant 0 : i32
    return %arg0, %c0_i32 : i32, i32
  }
}

</mosaic_0001>

<llo_original>
// kernel: tpu_custom_call.1
$region0: #{tpu_custom_call.1}
  #allocation0 [shape = 'u32[]', space=smem, size = 0x4, offset = 0x4, fixed_abs, tag = 'smem constant byte address 0x4 - core index']
  #allocation1 [shape = 'u32[144,128]{1,0:T(1,128)}', space=vmem, size = 0x12000, scoped, tag = 'internal scratch']
  #allocation2 [shape = 'f32[8,128]{1,0:T(8,128)}', space=vmem, size = 0x1000, scoped, tag = 'scratch operand']
  #allocation3 [shape = 's32[1]{0}', space=sflag, size = 0x4, scoped, tag = 'scratch operand']
  #allocation4 [shape = 's32[1]{0}', space=sflag, size = 0x4, scoped, tag = 'scoped memory for tpu_custom_call.1']
  #allocation5 [shape = 'u8[512]{0}', space=smem, size = 0x200, scoped, tag = 'prefetched SMEM operand 0']
  #allocation8 [shape = 's32[]', space=sflag, size = 0x4, offset = 0, fixed_abs, tag = 'sflag constant byte address 0x0 - dummy sync flag']
  #allocation9 [shape = 's32[]', space=sflag, size = 0x4, offset = 0, fixed_abs, tag = 'sflag constant byte address 0x0 - dummy sync flag']
  #allocation10 [shape = 'u32[]', space=smem, size = 0x4, offset = 0x44, fixed_abs, tag = 'smem constant byte address 0x44 - assertion arg 0']
  #allocation11 [shape = 'u32[]', space=smem, size = 0x4, offset = 0x48, fixed_abs, tag = 'smem constant byte address 0x48 - assertion arg 1']
  %s0 = inlined_call_operand.hbm [shape: s32[16], index: 0, kind: input, shape index: {}]
  %s1 = inlined_call_operand.hbm [shape: f32[32,128], index: 1, kind: input, shape index: {}]
  %s2 = inlined_call_operand.hbm [shape: f32[16,128], index: 2, kind: output, shape index: {}]
  %s3 = sld [smem:[#allocation0]]
  $region43: #{tpu_custom_call.1} parent=0
    _
  %s5 = ssub.s32 1, %s3
  %s6 = scalar_select 0, %s5, %s3
  %8 = dma.hbm_to_smem %s0, 16, [#allocation5], [#allocation4]
  %9 = dma.done [#allocation4], 16
  %10 = sfence
  $region1: #{tpu_custom_call.1} parent=0
    #allocation6 [shape = 'u8[8192]{0}', space=vmem, size = 0x2000, scoped, tag = 'output window, operand 0']
    #allocation7 [shape = 's32[2]{0}', space=sflag, size = 0x8, scoped, tag = 'scoped memory for tpu_custom_call.1']
    %11 = vsyncpa [#allocation7], 0
    %s12 = scalar_lea.sflag [#allocation7], 1
    %13 = vsyncpa %s12, 0
    loop: start=0, step=1, limit=3
    $region2: #{tpu_custom_call.1} parent=1 // loop_pre_header
      _
    $region3: #{tpu_custom_call.1} parent=1 // loop_header
      %s15 = sphi 0, %s19
      %p16 = scmp.ge.s32.totalorder %s15, 3
      %s24 = sphi 0, %s26
      %s27 = sphi 0, %s24
      %s37 = sphi 0, %s27
    $region4: #{tpu_custom_call.1} parent=1 // loop_header_branch
      %18 = sbr.rel (%p16) target = $region8
    $region5: #{tpu_custom_call.1} parent=1 // loop_body
      %s20 = ssub.s32 %s15, 1
      %s21 = sadd.s32 %s15, 1
      %s22 = ssub.s32 %s15, %s21
      %p23 = scmp.eq.s32.totalorder %s22, 0
      %s25 = sadd.s32 %s24, 1
      %s26 = scalar_select %p23, %s24, %s25
      %p28 = pneg %p23
      %p29 = scmp.eq.s32.totalorder %s15, 1
      %p30 = por %p28, %p29
      %p31 = scmp.ne.s32.totalorder %s24, %s27
      %p32 = scmp.eq.s32.totalorder %s15, 0
      %p33 = por %p31, %p32
      %p34 = scmp.ne.s32.totalorder %s24, %s27
      %p35 = scmp.eq.s32.totalorder %s20, 1
      %p36 = por %p34, %p35
      %p38 = scmp.ne.s32.totalorder %s27, %s37
      %p39 = scmp.eq.s32.totalorder %s20, 0
      %p40 = por %p38, %p39
      %p41 = scmp.lt.s32.totalorder %s15, 2
      // Predicated region
      $region9: #{tpu_custom_call.1} parent=5 // pred_check
        %p42 = pneg %p41
      $region10: #{tpu_custom_call.1} parent=5 // pred_check_branch
        %44 = sbr.rel (%p42) target = $region12
      $region11: #{tpu_custom_call.1} parent=5 // pred_region
        %p45 = pneg %p33
        %p46 = pneg %p30
        %s47 = sand.u32 %s24, 1
        %s48 = scalar_lea.sflag [#allocation7], %s47
        %s49 = sand.u32 %s24, 1
        %s50 = smul.addr %s49, 8
        %s51 = scalar_lea.vmem [#allocation6], %s50
        %s52 = smul.u32 %s15, 8
        loop: start=0, step=1, limit=8
        $region13: #{tpu_custom_call.1} parent=11 // loop_pre_header
          _
        $region14: #{tpu_custom_call.1} parent=11 // loop_header
          %s54 = sphi 0, %s58
          %p55 = scmp.ge.s32.totalorder %s54, 8
        $region15: #{tpu_custom_call.1} parent=11 // loop_header_branch
          %57 = sbr.rel (%p55) target = $region19
        $region16: #{tpu_custom_call.1} parent=11 // loop_body
          %s59 = sadd.s32 %s52, %s54
          %s60 = sld [smem:[#allocation5 + %s59]]
          %p61 = scmp.gt.s32.totalorder %s60, 0
          %s62 = scalar_select %p61, %s60, 0
          %p63 = scmp.lt.s32.totalorder %s62, 31
          %s64 = scalar_select %p63, %s62, 31
          %s65 = smul.addr %s64, 16
          %s66 = scalar_lea.hbm %s1, %s65
          %s67 = scalar_lea.vmem [#allocation2], %s54
          // Predicated region
          $region20: #{tpu_custom_call.1} parent=16 // pred_check
            _
          $region21: #{tpu_custom_call.1} parent=16 // pred_check_branch
            %69 = sbr.rel target = $region23
          $region22: #{tpu_custom_call.1} parent=16 // pred_region
            %70 = sst [smem:[#allocation10]] [#allocation9]
            %71 = sst [smem:[#allocation11]] [#allocation8]
          $region23: #{tpu_custom_call.1} parent=16 // pred_fallthru
            _
          %73 = shalt.err (0)
          %s75 = sshll.u32 %s67, 4
          %s76 = int_to_ptr.vmem [resolvable:$true] %s75
          %78 = dma.hbm_to_vmem [thread:$0]  %s66, 16, %s76, [#allocation3]
        $region17: #{tpu_custom_call.1} parent=11 // loop_footer
          %s58 = sadd.s32 1, %s54
        $region18: #{tpu_custom_call.1} parent=11 // loop_footer_branch
          %53 = sbr.rel target = $region14
        $region19: #{tpu_custom_call.1} parent=11 // loop_exit
          _
        loop: start=0, step=1, limit=8
        $region24: #{tpu_custom_call.1} parent=11 // loop_pre_header
          _
        $region25: #{tpu_custom_call.1} parent=11 // loop_header
          %s80 = sphi 0, %s84
          %p81 = scmp.ge.s32.totalorder %s80, 8
        $region26: #{tpu_custom_call.1} parent=11 // loop_header_branch
          %83 = sbr.rel (%p81) target = $region30
        $region27: #{tpu_custom_call.1} parent=11 // loop_body
          %86 = dma.done [#allocation3], 16
        $region28: #{tpu_custom_call.1} parent=11 // loop_footer
          %s84 = sadd.s32 1, %s80
        $region29: #{tpu_custom_call.1} parent=11 // loop_footer_branch
          %79 = sbr.rel target = $region25
        $region30: #{tpu_custom_call.1} parent=11 // loop_exit
          _
        %v87 = vld [vmem:[#allocation2] sm:$0xff]
        %v88 = vmul.f32 %v87, 11.313708
        %89 = vst [vmem:[%s51] sm:$0xff] %v88
        %s90 = sand.u32 %s24, 1
        %s91 = scalar_lea.sflag [#allocation7], %s90
        %s92 = sand.u32 %s24, 1
        %s93 = smul.addr %s92, 8
        %s94 = scalar_lea.vmem [#allocation6], %s93
        // Predicated region
        $region31: #{tpu_custom_call.1} parent=11 // pred_check
          %p95 = pneg %p30
        $region32: #{tpu_custom_call.1} parent=11 // pred_check_branch
          %97 = sbr.rel (%p95) target = $region34
        $region33: #{tpu_custom_call.1} parent=11 // pred_region
          %s99 = ssub.s32 128, 128
          %100 = vsyncadd %s91, %s99
          %s101 = smul.addr %s15, 128
          %s102 = scalar_lea.hbm %s2, %s101
          %s104 = sshll.u32 %s94, 4
          %s105 = int_to_ptr.vmem [resolvable:$true] %s104
          %107 = dma.vmem_to_hbm [thread:$0]  %s105, 128, %s102, %s91
        $region34: #{tpu_custom_call.1} parent=11 // pred_fallthru
          _
      $region12: #{tpu_custom_call.1} parent=5 // pred_fallthru
        _
      %p108 = scmp.le.s32.totalorder 1, %s15
      // Predicated region
      $region35: #{tpu_custom_call.1} parent=5 // pred_check
        %p109 = pneg %p108
      $region36: #{tpu_custom_call.1} parent=5 // pred_check_branch
        %111 = sbr.rel (%p109) target = $region38
      $region37: #{tpu_custom_call.1} parent=5 // pred_region
        %s112 = ssub.s32 %s15, 1
        // Predicated region
        $region39: #{tpu_custom_call.1} parent=37 // pred_check
          %p113 = pneg %p36
        $region40: #{tpu_custom_call.1} parent=37 // pred_check_branch
          %115 = sbr.rel (%p113) target = $region42
        $region41: #{tpu_custom_call.1} parent=37 // pred_region
          %s116 = sand.u32 %s27, 1
          %s117 = scalar_lea.sflag [#allocation7], %s116
          %s118 = sand.u32 %s27, 1
          %s119 = smul.addr %s118, 8
          %s120 = scalar_lea.vmem [#allocation6], %s119
          %121 = dma.done %s117, 128
        $region42: #{tpu_custom_call.1} parent=37 // pred_fallthru
          _
      $region38: #{tpu_custom_call.1} parent=5 // pred_fallthru
        _
    $region6: #{tpu_custom_call.1} parent=1 // loop_footer
      %s19 = sadd.s32 1, %s15
    $region7: #{tpu_custom_call.1} parent=1 // loop_footer_branch
      %14 = sbr.rel target = $region3
    $region8: #{tpu_custom_call.1} parent=1 // loop_exit
      _
    %122 = vsyncpa [#allocation7], 1
    %s123 = scalar_lea.sflag [#allocation7], 1
    %124 = vsyncpa %s123, 1
  %125 = vsyncmov [#allocation3]
  %s126 = vpop.sfrf %125
  %p127 = scmp.eq.s32.totalorder %s126, 0
  %p128 = pneg %p127
  %130 = shalt.err (%p128)

</llo_original>
